<compile_context>
chip_gen: v6e
topology: v6e:2x2x1
jax: 0.10.0
libtpu: 0.0.40
codegen_flags: <defaults>
</compile_context>

<pallas_src>
import functools

import jax
import jax.numpy as jnp
from jax import lax
from jax.experimental import pallas as pl
from jax.experimental.pallas import tpu as pltpu


def _round_up(x: int, m: int) -> int:
    return ((x + m - 1) // m) * m


def _char_embed_kernel(seed_ref, ids_ref, table_ref, out_ref, *, drop_rate: float):
    """One tile: folded one-hot gather on the MXU + (optional) inverted dropout.

    seed_ref : SMEM (1,) int32
    ids_ref  : VMEM (tile_rows, fold) int32, already offset by slot*vocab
    table_ref: VMEM (fold*vocab, fold*dim) f32 block-diagonal folded table
    out_ref  : VMEM (tile_rows, fold*dim) f32 lane-dense output block
    """
    rows, out_width = out_ref.shape
    fold = ids_ref.shape[1]
    k = table_ref.shape[0]                       # fold * vocab (contraction dim)

    ids = ids_ref[...]                           # (rows, fold) int32
    col = lax.broadcasted_iota(jnp.int32, (rows, k), 1)
    # Folded one-hot: column f*V + ids[r, f] is hot for each fold slot f
    # (slots occupy disjoint column ranges, so OR == exact one-hot-per-slot).
    onehot = col == ids[:, 0:1]
    for f in range(1, fold):
        onehot = onehot | (col == ids[:, f:f + 1])

    embeds = jnp.dot(onehot.astype(jnp.float32), table_ref[...],
                     preferred_element_type=jnp.float32)      # (rows, out_width)

    if drop_rate > 0.0:
        # Stateless counter-based hash (murmur3 finalizer) -> uniform uint32
        # per output element; unique across tiles via the global row index.
        base = (pl.program_id(0) * rows).astype(jnp.uint32)
        row_iota = lax.broadcasted_iota(jnp.uint32, (rows, out_width), 0)
        col_iota = lax.broadcasted_iota(jnp.uint32, (rows, out_width), 1)
        x = (base + row_iota) * jnp.uint32(out_width) + col_iota
        x = x ^ seed_ref[0].astype(jnp.uint32)
        x = x ^ (x >> 16)
        x = x * jnp.uint32(0x85EBCA6B)
        x = x ^ (x >> 13)
        x = x * jnp.uint32(0xC2B2AE35)
        x = x ^ (x >> 16)

        threshold = jnp.uint32(min(int(drop_rate * (2.0 ** 32)), 2 ** 32 - 1))
        keep = x >= threshold                                  # P(keep) = 1 - p
        scale = jnp.float32(1.0 / (1.0 - drop_rate))
        embeds = jnp.where(keep, embeds * scale, jnp.float32(0.0))

    out_ref[...] = embeds.astype(out_ref.dtype)


def char_embeddings_forward(words_seq, emb_table, seed, drop_rate, *,
                            max_tile_rows: int = 256):
    """words_seq: int [batch, seq]; emb_table: f32 [vocab, embed_dim]."""
    batch, seq = words_seq.shape
    vocab, dim = emb_table.shape
    n = batch * seq

    # Fold several tokens per 128-lane output row when embed_dim divides 128.
    fold = 128 // dim if (dim < 128 and 128 % dim == 0) else 1
    out_width = fold * dim

    rows = -(-n // fold)                                  # ceil(n / fold)
    tile_rows = min(max_tile_rows, _round_up(rows, 8))    # sublane-aligned tile
    rows_padded = _round_up(rows, tile_rows)
    n_padded = rows_padded * fold

    # Pad with index 0 (padding row of the table is zero; padding discarded anyway),
    # fold, and pre-offset each fold slot by slot*vocab for the block-diag table.
    ids = jnp.pad(words_seq.reshape(-1).astype(jnp.int32), (0, n_padded - n))
    ids = ids.reshape(rows_padded, fold)
    ids = ids + (jnp.arange(fold, dtype=jnp.int32) * vocab)[None, :]

    # Block-diagonal folded table: (fold*vocab, fold*dim).
    if fold > 1:
        big_table = jnp.einsum(
            "fg,vd->fvgd", jnp.eye(fold, dtype=emb_table.dtype), emb_table
        ).reshape(fold * vocab, fold * dim)
    else:
        big_table = emb_table

    seed_arr = jnp.array([seed], dtype=jnp.int32)
    grid = (rows_padded // tile_rows,)

    out_folded = pl.pallas_call(
        functools.partial(_char_embed_kernel, drop_rate=float(drop_rate)),
        out_shape=jax.ShapeDtypeStruct((rows_padded, out_width), jnp.float32),
        grid=grid,
        in_specs=[
            # PRNG seed: scalar in SMEM, same block every tile.
            pl.BlockSpec((1,), lambda i: (0,),
                         memory_space=pltpu.MemorySpace.SMEM),
            # token-id tile, streamed/pipelined along the grid.
            pl.BlockSpec((tile_rows, fold), lambda i: (i, 0)),
            # folded table: resident in VMEM across all grid steps.
            pl.BlockSpec((fold * vocab, out_width), lambda i: (0, 0)),
        ],
        out_specs=pl.BlockSpec((tile_rows, out_width), lambda i: (i, 0)),
        compiler_params=pltpu.CompilerParams(
            dimension_semantics=("parallel",),        # megacore split on v7x
            vmem_limit_bytes=32 * 1024 * 1024,        # safe on 64 MiB v7x parts
        ),
    )(seed_arr, ids, big_table)

    # Un-fold (pure layout plumbing in the wrapper) and strip padding.
    out = out_folded.reshape(rows_padded * fold, dim)[:n]
    return out.reshape(batch, seq, dim)


if __name__ == "__main__":
    # Small shapes consistent with the module's forward.
    vocab_size = 32
    embed_dim = 32
    drop_out_rate = 0.5
    batch, seq = 2, 8

    key = jax.random.PRNGKey(0)
    k_emb, k_idx = jax.random.split(key)

    # Deterministic parameters; row 0 zero (padding_idx=0).
    emb_table = jax.random.normal(k_emb, (vocab_size, embed_dim), jnp.float32)
    emb_table = emb_table.at[0].set(0.0)

    # Deterministic char indices (exercise the padding row too).
    words_seq = jax.random.randint(k_idx, (batch, seq), 0, vocab_size,
                                   dtype=jnp.int32)
    words_seq = words_seq.at[0, 0].set(0)

    ref = emb_table[words_seq]

    # 1) Eval semantics (p=0): exact embedding gather.
    out_eval = jax.block_until_ready(
        char_embeddings_forward(words_seq, emb_table, seed=0, drop_rate=0.0))
    assert out_eval.shape == (batch, seq, embed_dim)
    assert jnp.allclose(out_eval, ref, atol=1e-6), "embedding gather mismatch"

    # 2) Training semantics (p=0.5): each element is 0 (dropped / padding) or
    #    the embedding scaled by 1/(1-p).
    out_train = jax.block_until_ready(
        char_embeddings_forward(words_seq, emb_table, seed=1234,
                                drop_rate=drop_out_rate))
    scale = 1.0 / (1.0 - drop_out_rate)
    ok = jnp.all(
        jnp.isclose(out_train, 0.0, atol=1e-6)
        | jnp.isclose(out_train, ref * scale, atol=1e-4)
    )
    assert bool(ok), "dropout output mismatch"

    # Loose sanity band on the dropped fraction (deterministic given the seed).
    zero_frac = float(jnp.mean(
        jnp.isclose(out_train, 0.0, atol=1e-6).astype(jnp.float32)))
    assert 0.2 < zero_frac < 0.9, f"implausible dropout fraction {zero_frac}"

    print("KERNEL_OK")
</pallas_src>

<mosaic_0001>
module attributes {stable_mosaic.version = 11 : i64} {
  func.func @_char_embed_kernel(%arg0: i32, %arg1: memref<1xi32, #tpu.memory_space<smem>>, %arg2: memref<8x4xi32, #tpu.memory_space<vmem>>, %arg3: memref<128x128xf32, #tpu.memory_space<vmem>>, %arg4: memref<8x128xf32, #tpu.memory_space<vmem>>) attributes {dimension_semantics = [#tpu.dimension_semantics<parallel>], iteration_bounds = array<i64: 1>, scalar_prefetch = 0 : i64, scratch_operands = 0 : i64, tpu.core_type = #tpu.core_type<tc>, window_params = [{transform_indices = @transform_0, window_bounds = array<i64: 1>}, {transform_indices = @transform_1, window_bounds = array<i64: 8, 4>}, {pipeline_mode = #tpu.pipeline_mode<synchronous>, transform_indices = @transform_2, window_bounds = array<i64: 128, 128>}, {transform_indices = @transform_3, window_bounds = array<i64: 8, 128>}]} {
    %c0 = arith.constant 0 : index
    %c0_0 = arith.constant 0 : index
    %0 = vector.load %arg2[%c0, %c0_0] : memref<8x4xi32, #tpu.memory_space<vmem>>, vector<8x4xi32>
    %1 = tpu.iota {dimensions = array<i32: 1>} : vector<8x128xi32>
    %2 = vector.extract_strided_slice %0 {offsets = [0, 0], sizes = [8, 1], strides = [1, 1]} : vector<8x4xi32> to vector<8x1xi32>
    %3 = vector.broadcast %2 : vector<8x1xi32> to vector<8x128xi32>
    %4 = arith.cmpi eq, %1, %3 : vector<8x128xi32>
    %5 = vector.extract_strided_slice %0 {offsets = [0, 1], sizes = [8, 1], strides = [1, 1]} : vector<8x4xi32> to vector<8x1xi32>
    %6 = vector.broadcast %5 : vector<8x1xi32> to vector<8x128xi32>
    %7 = arith.cmpi eq, %1, %6 : vector<8x128xi32>
    %8 = arith.ori %4, %7 : vector<8x128xi1>
    %9 = vector.extract_strided_slice %0 {offsets = [0, 2], sizes = [8, 1], strides = [1, 1]} : vector<8x4xi32> to vector<8x1xi32>
    %10 = vector.broadcast %9 : vector<8x1xi32> to vector<8x128xi32>
    %11 = arith.cmpi eq, %1, %10 : vector<8x128xi32>
    %12 = arith.ori %8, %11 : vector<8x128xi1>
    %13 = vector.extract_strided_slice %0 {offsets = [0, 3], sizes = [8, 1], strides = [1, 1]} : vector<8x4xi32> to vector<8x1xi32>
    %14 = vector.broadcast %13 : vector<8x1xi32> to vector<8x128xi32>
    %15 = arith.cmpi eq, %1, %14 : vector<8x128xi32>
    %16 = arith.ori %12, %15 : vector<8x128xi1>
    %17 = arith.extui %16 : vector<8x128xi1> to vector<8x128xi32>
    %18 = arith.sitofp %17 : vector<8x128xi32> to vector<8x128xf32>
    %c0_1 = arith.constant 0 : index
    %c0_2 = arith.constant 0 : index
    %19 = vector.load %arg3[%c0_1, %c0_2] : memref<128x128xf32, #tpu.memory_space<vmem>>, vector<128x128xf32>
    %cst = arith.constant dense<0.000000e+00> : vector<8x128xf32>
    %20 = tpu.matmul %18, %19, %cst {dimension_numbers = #tpu.dot_dimension_numbers<[1], [0], [0], [1], [0, 0, 1, 1], [], []>} : vector<8x128xf32>, vector<128x128xf32>, vector<8x128xf32> -> vector<8x128xf32>
    %c0_3 = arith.constant 0 : index
    %c0_4 = arith.constant 0 : index
    %21 = vector.load %arg4[%c0_3, %c0_4] : memref<8x128xf32, #tpu.memory_space<vmem>>, vector<8x128xf32>
    tpu.vector_store %arg4[%c0_3, %c0_4], %20 {strides = array<i32>} : memref<8x128xf32, #tpu.memory_space<vmem>>, vector<8x128xf32>,
    return
  }
  func.func @transform_0(%arg0: i32) -> i32 {
    %c0_i32 = arith.constant 0 : i32
    %c0_i32_0 = arith.constant 0 : i32
    return %c0_i32 : i32
  }
  func.func @transform_1(%arg0: i32) -> (i32, i32) {
    %c0_i32 = arith.constant 0 : i32
    %c0_i32_0 = arith.constant 0 : i32
    return %arg0, %c0_i32 : i32, i32
  }
  func.func @transform_2(%arg0: i32) -> (i32, i32) {
    %c0_i32 = arith.constant 0 : i32
    %c0_i32_0 = arith.constant 0 : i32
    %c0_i32_1 = arith.constant 0 : i32
    return %c0_i32, %c0_i32_0 : i32, i32
  }
  func.func @transform_3(%arg0: i32) -> (i32, i32) {
    %c0_i32 = arith.constant 0 : i32
    %c0_i32_0 = arith.constant 0 : i32
    return %arg0, %c0_i32 : i32, i32
  }
}

</mosaic_0001>

<llo_original>
// kernel: tpu_custom_call.1
$region0: #{tpu_custom_call.1}
  #allocation0 [shape = 'u32[]', space=smem, size = 0x4, offset = 0x4, fixed_abs, tag = 'smem constant byte address 0x4 - core index']
  #allocation1 [shape = 'u32[144,128]{1,0:T(1,128)}', space=vmem, size = 0x12000, scoped, tag = 'internal scratch']
  #allocation2 [shape = 's32[1]{0:T(128)S(6)}', space=smem, size = 0x200, scoped, tag = 'scoped memory for tpu_custom_call.1']
  %s0 = inlined_call_operand.<no memory space> [shape: s32[1], index: 0, kind: input, shape index: {}]
  %s1 = inlined_call_operand.vmem [shape: s32[8,4], index: 1, kind: input, shape index: {}]
  %s2 = inlined_call_operand.hbm [shape: f32[128,128], index: 2, kind: input, shape index: {}]
  %s3 = inlined_call_operand.hbm [shape: f32[8,128], index: 3, kind: output, shape index: {}]
  %s4 = sld [smem:[#allocation0]]
  $region26: #{tpu_custom_call.1} parent=0
    _
  %s6 = ssub.s32 1, %s4
  %s7 = scalar_select 0, %s6, %s4
  %8 = sst [smem:[#allocation2]] %s0
  $region1: #{tpu_custom_call.1} parent=0
    #allocation3 [shape = 'u8[65536]{0}', space=vmem, size = 0x10000, scoped, tag = 'input window, operand 2, single buffered']
    #allocation4 [shape = 's32[1]{0}', space=sflag, size = 0x4, scoped, tag = 'scoped memory for tpu_custom_call.1']
    #allocation5 [shape = 's32[1]{0}', space=sflag, size = 0x4, scoped, tag = 'scoped memory for tpu_custom_call.1']
    #allocation6 [shape = 'u8[4096]{0}', space=vmem, size = 0x1000, scoped, tag = 'output window, operand 0, single buffered']
    %9 = vsyncpa [#allocation4], 0
    %10 = vsyncpa [#allocation5], 0
    // Predicated region
    $region2: #{tpu_custom_call.1} parent=1 // pred_check
      _
    $region3: #{tpu_custom_call.1} parent=1 // pred_check_branch
      %12 = sbr.rel (0) target = $region5
    $region4: #{tpu_custom_call.1} parent=1 // pred_region
      _
    $region5: #{tpu_custom_call.1} parent=1 // pred_fallthru
      _
    // Predicated region
    $region6: #{tpu_custom_call.1} parent=1 // pred_check
      _
    $region7: #{tpu_custom_call.1} parent=1 // pred_check_branch
      %14 = sbr.rel (0) target = $region9
    $region8: #{tpu_custom_call.1} parent=1 // pred_region
      _
    $region9: #{tpu_custom_call.1} parent=1 // pred_fallthru
      _
    // Predicated region
    $region10: #{tpu_custom_call.1} parent=1 // pred_check
      _
    $region11: #{tpu_custom_call.1} parent=1 // pred_check_branch
      %16 = sbr.rel (0) target = $region13
    $region12: #{tpu_custom_call.1} parent=1 // pred_region
      %s18 = ssub.s32 2048, 2048
      %19 = vsyncadd [#allocation4], %s18
      %s20 = sshll.u32 [#allocation3], 4
      %s21 = int_to_ptr.vmem [resolvable:$true] %s20
      %26 = dma.hbm_to_vmem [thread:$0]  %s2, 2048, %s21, [#allocation4], 128, 128, 8
    $region13: #{tpu_custom_call.1} parent=1 // pred_fallthru
      _
    // Predicated region
    $region14: #{tpu_custom_call.1} parent=1 // pred_check
      _
    $region15: #{tpu_custom_call.1} parent=1 // pred_check_branch
      %28 = sbr.rel (0) target = $region17
    $region16: #{tpu_custom_call.1} parent=1 // pred_region
      %29 = dma.done [#allocation4], 2048
    $region17: #{tpu_custom_call.1} parent=1 // pred_fallthru
      _
    %v30 = vld [vmem:[%s1] sm:$0xff]
    %v31 = vlaneseq
    %v32 = vand.u32 %v31, 127
    %33 = vset.pattern.permute.xlu0 0
    %34 = vperm.xlu0 %33, %v30
    %v35 = vpop.permute.xlu0 %34
    %vm36 = vcmp.eq.s32.totalorder %v32, %v35
    %37 = vset.pattern.permute.xlu0 1
    %38 = vperm.xlu0 %37, %v30
    %v39 = vpop.permute.xlu0 %38
    %vm40 = vcmp.eq.s32.totalorder %v32, %v39
    %vm41 = vmor %vm36, %vm40
    %42 = vset.pattern.permute.xlu0 2
    %43 = vperm.xlu0 %42, %v30
    %v44 = vpop.permute.xlu0 %43
    %vm45 = vcmp.eq.s32.totalorder %v32, %v44
    %vm46 = vmor %vm41, %vm45
    %47 = vset.pattern.permute.xlu0 3
    %48 = vperm.xlu0 %47, %v30
    %v49 = vpop.permute.xlu0 %48
    %vm50 = vcmp.eq.s32.totalorder %v32, %v49
    %vm51 = vmor %vm46, %vm50
    %v52 = vsel %vm51, 1, 0
    %v53 = vcvt.s32.f32 %v52
    %v54 = vld [vmem:[#allocation3] sm:$0xff]
    %v55 = vld [vmem:[#allocation3 + $0x8] sm:$0xff]
    %v56 = vld [vmem:[#allocation3 + $0x10] sm:$0xff]
    %v57 = vld [vmem:[#allocation3 + $0x18] sm:$0xff]
    %v58 = vld [vmem:[#allocation3 + $0x20] sm:$0xff]
    %v59 = vld [vmem:[#allocation3 + $0x28] sm:$0xff]
    %v60 = vld [vmem:[#allocation3 + $0x30] sm:$0xff]
    %v61 = vld [vmem:[#allocation3 + $0x38] sm:$0xff]
    %v62 = vld [vmem:[#allocation3 + $0x40] sm:$0xff]
    %v63 = vld [vmem:[#allocation3 + $0x48] sm:$0xff]
    %v64 = vld [vmem:[#allocation3 + $0x50] sm:$0xff]
    %v65 = vld [vmem:[#allocation3 + $0x58] sm:$0xff]
    %v66 = vld [vmem:[#allocation3 + $0x60] sm:$0xff]
    %v67 = vld [vmem:[#allocation3 + $0x68] sm:$0xff]
    %v68 = vld [vmem:[#allocation3 + $0x70] sm:$0xff]
    %v69 = vld [vmem:[#allocation3 + $0x78] sm:$0xff]
    %70 = vmatprep.subr.mxu0 0.0
    %71 = vmatpush1.msra.mxu0 %v69
    %72 = vmatprep.subr.mxu0 0.0
    %73 = vmatpush1.msra.mxu0 %v68
    %74 = vmatprep.subr.mxu0 0.0
    %75 = vmatpush1.msra.mxu0 %v67
    %76 = vmatprep.subr.mxu0 0.0
    %77 = vmatpush1.msra.mxu0 %v66
    %78 = vmatprep.subr.mxu0 0.0
    %79 = vmatpush1.msra.mxu0 %v65
    %80 = vmatprep.subr.mxu0 0.0
    %81 = vmatpush1.msra.mxu0 %v64
    %82 = vmatprep.subr.mxu0 0.0
    %83 = vmatpush1.msra.mxu0 %v63
    %84 = vmatprep.subr.mxu0 0.0
    %85 = vmatpush1.msra.mxu0 %v62
    %86 = vmatprep.subr.mxu0 0.0
    %87 = vmatpush1.msra.mxu0 %v61
    %88 = vmatprep.subr.mxu0 0.0
    %89 = vmatpush1.msra.mxu0 %v60
    %90 = vmatprep.subr.mxu0 0.0
    %91 = vmatpush1.msra.mxu0 %v59
    %92 = vmatprep.subr.mxu0 0.0
    %93 = vmatpush1.msra.mxu0 %v58
    %94 = vmatprep.subr.mxu0 0.0
    %95 = vmatpush1.msra.mxu0 %v57
    %96 = vmatprep.subr.mxu0 0.0
    %97 = vmatpush1.msra.mxu0 %v56
    %98 = vmatprep.subr.mxu0 0.0
    %99 = vmatpush1.msra.mxu0 %v55
    %100 = vmatprep.subr.mxu0 0.0
    %101 = vmatpush1.msra.mxu0 %v54
    %102 = vmatprep.subr.mxu0 0.0
    %103 = vmatpush2.msra.mxu0 0.0
    %104 = vmatprep.subr.mxu0 0.0
    %105 = vmatpush2.msra.mxu0 0.0
    %106 = vmatprep.subr.mxu0 0.0
    %107 = vmatpush2.msra.mxu0 0.0
    %108 = vmatprep.subr.mxu0 0.0
    %109 = vmatpush2.msra.mxu0 0.0
    %110 = vmatprep.subr.mxu0 0.0
    %111 = vmatpush2.msra.mxu0 0.0
    %112 = vmatprep.subr.mxu0 0.0
    %113 = vmatpush2.msra.mxu0 0.0
    %114 = vmatprep.subr.mxu0 0.0
    %115 = vmatpush2.msra.mxu0 0.0
    %116 = vmatprep.subr.mxu0 0.0
    %117 = vmatpush2.msra.mxu0 0.0
    %118 = vmatprep.subr.mxu0 0.0
    %119 = vmatpush2.msra.mxu0 0.0
    %120 = vmatprep.subr.mxu0 0.0
    %121 = vmatpush2.msra.mxu0 0.0
    %122 = vmatprep.subr.mxu0 0.0
    %123 = vmatpush2.msra.mxu0 0.0
    %124 = vmatprep.subr.mxu0 0.0
    %125 = vmatpush2.msra.mxu0 0.0
    %126 = vmatprep.subr.mxu0 0.0
    %127 = vmatpush2.msra.mxu0 0.0
    %128 = vmatprep.subr.mxu0 0.0
    %129 = vmatpush2.msra.mxu0 0.0
    %130 = vmatprep.subr.mxu0 0.0
    %131 = vmatpush2.msra.mxu0 0.0
    %132 = vmatprep.subr.mxu0 0.0
    %133 = vmatpush2.msra.mxu0 0.0
    %134 = vmatprep.mubr.f32.mxu0 0.0
    %135 = vmatmul.mubr.f32.gmra.mxu0 %v53
    %v136 = vpop.f32.mrf.mxu0
    %v137 = vadd.f32 0.0, %v136
    %v138 = vpop.f32.mrf.mxu0
    %139 = vdwg.mxu0
    %140 = vst [vmem:[#allocation6] sm:$0xff] %v137
    // Predicated region
    $region18: #{tpu_custom_call.1} parent=1 // pred_check
      _
    $region19: #{tpu_custom_call.1} parent=1 // pred_check_branch
      %142 = sbr.rel (0) target = $region21
    $region20: #{tpu_custom_call.1} parent=1 // pred_region
      %s144 = ssub.s32 128, 128
      %145 = vsyncadd [#allocation5], %s144
      %s147 = sshll.u32 [#allocation6], 4
      %s148 = int_to_ptr.vmem [resolvable:$true] %s147
      %150 = dma.vmem_to_hbm [thread:$0]  %s148, 128, %s3, [#allocation5]
    $region21: #{tpu_custom_call.1} parent=1 // pred_fallthru
      _
    // Predicated region
    $region22: #{tpu_custom_call.1} parent=1 // pred_check
      _
    $region23: #{tpu_custom_call.1} parent=1 // pred_check_branch
      %152 = sbr.rel (0) target = $region25
    $region24: #{tpu_custom_call.1} parent=1 // pred_region
      %153 = dma.done [#allocation5], 128
    $region25: #{tpu_custom_call.1} parent=1 // pred_fallthru
      _
    %154 = vsyncpa [#allocation4], 1
    %155 = vsyncpa [#allocation5], 1

</llo_original>
